<compile_context>
chip_gen: v5e
topology: v5e:2x2
jax: 0.10.0
libtpu: 0.0.40
codegen_flags: <defaults>
</compile_context>

<pallas_src>
import jax
import jax.numpy as jnp
from jax.experimental import pallas as pl
from jax.experimental.pallas import tpu as pltpu


def _relu6_tanh(x):
    # relu6-based hard tanh: clamps linearly to [-1, 1] (saturates at |x| >= 3).
    return jnp.clip(x + 3.0, 0.0, 6.0) / 3.0 - 1.0


def residual_average_kernel(x_ref, w_ref, win_t_ref, bin_ref, wout_t_ref, o_ref):
    # x_ref:      (TB*N, n_in)       flattened batch-block of set elements
    # w_ref:      (TB, N, N)         per-batch averaging weights
    # win_t_ref:  (n_in, n_middle)   pre-transposed avg_in weight
    # bin_ref:    (1, n_middle)      avg_in bias
    # wout_t_ref: (n_middle, n_in)   pre-transposed avg_out weight
    tbn, n_in = x_ref.shape
    tb, n_set, _ = w_ref.shape
    n_middle = win_t_ref.shape[1]

    x = x_ref[...].astype(jnp.float32)                     # (TB*N, n_in)
    w = w_ref[...].astype(jnp.float32)                     # (TB, N, N)

    # Exact reciprocal of the row sums (N divides per batch instead of N*N).
    # Precondition: rows of w sum to a strictly positive value.
    inv = 1.0 / jnp.sum(w, axis=-1, keepdims=True)         # (TB, N, 1)

    # avg_in: batched weighted average, then a single flattened MXU matmul.
    xa = jnp.einsum("bij,bjc->bic", w, x.reshape(tb, n_set, n_in),
                    preferred_element_type=jnp.float32) * inv      # (TB, N, n_in)
    h = jnp.dot(xa.reshape(tbn, n_in), win_t_ref[...],
                preferred_element_type=jnp.float32) + bin_ref[...]  # (TB*N, n_middle)
    h = _relu6_tanh(h)

    # avg_out: batched weighted average, then flattened MXU matmul (no bias).
    ha = jnp.einsum("bij,bjc->bic", w, h.reshape(tb, n_set, n_middle),
                    preferred_element_type=jnp.float32) * inv       # (TB, N, n_middle)
    y = jnp.dot(ha.reshape(tbn, n_middle), wout_t_ref[...],
                preferred_element_type=jnp.float32)                 # (TB*N, n_in)

    # residual
    o_ref[...] = (x + y).astype(o_ref.dtype)


def residual_average_block(x, w, w_in, b_in, w_out, *, tb=None):
    B, N, n_in = x.shape
    n_middle = w_in.shape[0]

    if tb is None:
        # Largest convenient batch block; keep the blocked grid length >= 2 when
        # possible so both v7x TensorCores get work.
        tb = 1
        for cand in (16, 8, 4, 2):
            if B % cand == 0 and B // cand >= 2:
                tb = cand
                break
    assert B % tb == 0, "batch must be divisible by the batch block size"

    # One-time (wrapper-side) layout prep: flatten x so the dense matmuls see
    # M = tb*N rows, and pre-transpose the static weights.
    x2d = x.reshape(B * N, n_in)
    win_t = w_in.T                      # (n_in, n_middle)
    wout_t = w_out.T                    # (n_middle, n_in)
    b2d = b_in.reshape(1, n_middle)

    out2d = pl.pallas_call(
        residual_average_kernel,
        out_shape=jax.ShapeDtypeStruct((B * N, n_in), x.dtype),
        grid_spec=pltpu.PrefetchScalarGridSpec(
            num_scalar_prefetch=0,
            grid=(B // tb,),
            in_specs=[
                pl.BlockSpec((tb * N, n_in), lambda i: (i, 0)),
                pl.BlockSpec((tb, N, N), lambda i: (i, 0, 0)),
                pl.BlockSpec((n_in, n_middle), lambda i: (0, 0)),
                pl.BlockSpec((1, n_middle), lambda i: (0, 0)),
                pl.BlockSpec((n_middle, n_in), lambda i: (0, 0)),
            ],
            out_specs=pl.BlockSpec((tb * N, n_in), lambda i: (i, 0)),
        ),
        # The residual output has the same shape/dtype as x: alias to avoid a
        # second HBM buffer / extra writeback traffic.
        input_output_aliases={0: 0},
        compiler_params=pltpu.CompilerParams(
            dimension_semantics=("parallel",)),
    )(x2d, w, win_t, b2d, wout_t)

    return out2d.reshape(B, N, n_in)


def residual_average_block_ref(x, w, w_in, b_in, w_out):
    wn = w / jnp.sum(w, axis=-1, keepdims=True)
    xa = jnp.einsum("bij,bjc->bic", wn, x)
    h = _relu6_tanh(xa @ w_in.T + b_in)
    ha = jnp.einsum("bij,bjc->bic", wn, h)
    return x + ha @ w_out.T


if __name__ == "__main__":
    B, N, n_in, n_middle = 16, 16, 8, 16   # batch-blocked: TB=8 -> grid of 2 steps

    key = jax.random.PRNGKey(0)
    kx, kw, k1, k2, k3 = jax.random.split(key, 5)

    x = jax.random.normal(kx, (B, N, n_in), dtype=jnp.float32)
    # non-negative averaging weights (rows guaranteed to have positive sums)
    w = jax.random.uniform(kw, (B, N, N), dtype=jnp.float32, minval=0.1, maxval=1.0)

    # deterministic parameter init (synthetic; no checkpoint load)
    w_in = 0.1 * jax.random.normal(k1, (n_middle, n_in), dtype=jnp.float32)
    b_in = 0.1 * jax.random.normal(k2, (n_middle,), dtype=jnp.float32)
    w_out = 0.1 * jax.random.normal(k3, (n_in, n_middle), dtype=jnp.float32)

    out = residual_average_block(x, w, w_in, b_in, w_out)
    out = jax.block_until_ready(out)

    ref = residual_average_block_ref(x, w, w_in, b_in, w_out)
    assert out.shape == (B, N, n_in)
    assert jnp.allclose(out, ref, atol=1e-5, rtol=1e-5)

    print("KERNEL_OK")
</pallas_src>

<mosaic_0001>
module attributes {stable_mosaic.version = 11 : i64} {
  func.func @residual_average_kernel(%arg0: i32, %arg1: memref<128x8xf32, #tpu.memory_space<vmem>>, %arg2: memref<8x16x16xf32, #tpu.memory_space<vmem>>, %arg3: memref<8x16xf32, #tpu.memory_space<vmem>>, %arg4: memref<1x16xf32, #tpu.memory_space<vmem>>, %arg5: memref<16x8xf32, #tpu.memory_space<vmem>>, %arg6: memref<128x8xf32, #tpu.memory_space<vmem>>) attributes {dimension_semantics = [#tpu.dimension_semantics<parallel>], iteration_bounds = array<i64: 2>, scalar_prefetch = 0 : i64, scratch_operands = 0 : i64, tpu.core_type = #tpu.core_type<tc>, window_params = [{transform_indices = @transform_0, window_bounds = array<i64: 128, 8>}, {transform_indices = @transform_1, window_bounds = array<i64: 8, 16, 16>}, {pipeline_mode = #tpu.pipeline_mode<synchronous>, transform_indices = @transform_2, window_bounds = array<i64: 8, 16>}, {pipeline_mode = #tpu.pipeline_mode<synchronous>, transform_indices = @transform_3, window_bounds = array<i64: 1, 16>}, {pipeline_mode = #tpu.pipeline_mode<synchronous>, transform_indices = @transform_4, window_bounds = array<i64: 16, 8>}, {transform_indices = @transform_5, window_bounds = array<i64: 128, 8>}]} {
    %c0 = arith.constant 0 : index
    %c0_0 = arith.constant 0 : index
    %0 = vector.load %arg1[%c0, %c0_0] : memref<128x8xf32, #tpu.memory_space<vmem>>, vector<128x8xf32>
    %c0_1 = arith.constant 0 : index
    %c0_2 = arith.constant 0 : index
    %c0_3 = arith.constant 0 : index
    %1 = vector.load %arg2[%c0_1, %c0_2, %c0_3] : memref<8x16x16xf32, #tpu.memory_space<vmem>>, vector<8x16x16xf32>
    %cst = arith.constant dense<0.000000e+00> : vector<8x16xf32>
    %2 = vector.multi_reduction <add>, %1, %cst [2] : vector<8x16x16xf32> to vector<8x16xf32>
    %3 = vector.shape_cast %2 : vector<8x16xf32> to vector<8x16x1xf32>
    %cst_4 = arith.constant 1.000000e+00 : f32
    %4 = vector.broadcast %cst_4 : f32 to vector<8x16x1xf32>
    %5 = arith.divf %4, %3 : vector<8x16x1xf32>
    %6 = vector.shape_cast %0 : vector<128x8xf32> to vector<8x16x8xf32>
    "tpu.trace_start"() <{level = 10 : i32, message = "bij,bjc->bic"}> : () -> ()
    %cst_5 = arith.constant dense<0.000000e+00> : vector<8x16x8xf32>
    %7 = tpu.matmul %1, %6, %cst_5 {dimension_numbers = #tpu.dot_dimension_numbers<[2], [1], [1], [2], [0, 0, 0, 1, 1, 2], [0], [0]>} : vector<8x16x16xf32>, vector<8x16x8xf32>, vector<8x16x8xf32> -> vector<8x16x8xf32>
    "tpu.trace_stop"() : () -> ()
    %8 = vector.broadcast %5 : vector<8x16x1xf32> to vector<8x16x8xf32>
    %9 = arith.mulf %7, %8 : vector<8x16x8xf32>
    %10 = vector.shape_cast %9 : vector<8x16x8xf32> to vector<128x8xf32>
    %c0_6 = arith.constant 0 : index
    %c0_7 = arith.constant 0 : index
    %11 = vector.load %arg3[%c0_6, %c0_7] : memref<8x16xf32, #tpu.memory_space<vmem>>, vector<8x16xf32>
    %cst_8 = arith.constant dense<0.000000e+00> : vector<128x16xf32>
    %12 = tpu.matmul %10, %11, %cst_8 {dimension_numbers = #tpu.dot_dimension_numbers<[1], [0], [0], [1], [0, 0, 1, 1], [], []>} : vector<128x8xf32>, vector<8x16xf32>, vector<128x16xf32> -> vector<128x16xf32>
    %c0_9 = arith.constant 0 : index
    %c0_10 = arith.constant 0 : index
    %13 = vector.load %arg4[%c0_9, %c0_10] : memref<1x16xf32, #tpu.memory_space<vmem>>, vector<1x16xf32>
    %14 = vector.broadcast %13 : vector<1x16xf32> to vector<128x16xf32>
    %15 = arith.addf %12, %14 : vector<128x16xf32>
    %cst_11 = arith.constant 3.000000e+00 : f32
    %16 = vector.broadcast %cst_11 : f32 to vector<128x16xf32>
    %17 = arith.addf %15, %16 : vector<128x16xf32>
    %cst_12 = arith.constant 0.000000e+00 : f32
    %cst_13 = arith.constant 6.000000e+00 : f32
    %18 = vector.broadcast %cst_12 : f32 to vector<128x16xf32>
    %19 = arith.maximumf %18, %17 : vector<128x16xf32>
    %20 = vector.broadcast %cst_13 : f32 to vector<128x16xf32>
    %21 = arith.minimumf %20, %19 : vector<128x16xf32>
    %cst_14 = arith.constant 3.000000e+00 : f32
    %22 = vector.broadcast %cst_14 : f32 to vector<128x16xf32>
    %23 = arith.divf %21, %22 : vector<128x16xf32>
    %cst_15 = arith.constant 1.000000e+00 : f32
    %24 = vector.broadcast %cst_15 : f32 to vector<128x16xf32>
    %25 = arith.subf %23, %24 : vector<128x16xf32>
    %26 = vector.shape_cast %25 : vector<128x16xf32> to vector<8x16x16xf32>
    "tpu.trace_start"() <{level = 10 : i32, message = "bij,bjc->bic"}> : () -> ()
    %cst_16 = arith.constant dense<0.000000e+00> : vector<8x16x16xf32>
    %27 = tpu.matmul %1, %26, %cst_16 {dimension_numbers = #tpu.dot_dimension_numbers<[2], [1], [1], [2], [0, 0, 0, 1, 1, 2], [0], [0]>} : vector<8x16x16xf32>, vector<8x16x16xf32>, vector<8x16x16xf32> -> vector<8x16x16xf32>
    "tpu.trace_stop"() : () -> ()
    %28 = vector.broadcast %5 : vector<8x16x1xf32> to vector<8x16x16xf32>
    %29 = arith.mulf %27, %28 : vector<8x16x16xf32>
    %30 = vector.shape_cast %29 : vector<8x16x16xf32> to vector<128x16xf32>
    %c0_17 = arith.constant 0 : index
    %c0_18 = arith.constant 0 : index
    %31 = vector.load %arg5[%c0_17, %c0_18] : memref<16x8xf32, #tpu.memory_space<vmem>>, vector<16x8xf32>
    %cst_19 = arith.constant dense<0.000000e+00> : vector<128x8xf32>
    %32 = tpu.matmul %30, %31, %cst_19 {dimension_numbers = #tpu.dot_dimension_numbers<[1], [0], [0], [1], [0, 0, 1, 1], [], []>} : vector<128x16xf32>, vector<16x8xf32>, vector<128x8xf32> -> vector<128x8xf32>
    %33 = arith.addf %0, %32 : vector<128x8xf32>
    %c0_20 = arith.constant 0 : index
    %c0_21 = arith.constant 0 : index
    %34 = vector.load %arg6[%c0_20, %c0_21] : memref<128x8xf32, #tpu.memory_space<vmem>>, vector<128x8xf32>
    tpu.vector_store %arg6[%c0_20, %c0_21], %33 {strides = array<i32>} : memref<128x8xf32, #tpu.memory_space<vmem>>, vector<128x8xf32>,
    return
  }
  func.func @transform_0(%arg0: i32) -> (i32, i32) {
    %c0_i32 = arith.constant 0 : i32
    %c0_i32_0 = arith.constant 0 : i32
    return %arg0, %c0_i32 : i32, i32
  }
  func.func @transform_1(%arg0: i32) -> (i32, i32, i32) {
    %c0_i32 = arith.constant 0 : i32
    %c0_i32_0 = arith.constant 0 : i32
    %c0_i32_1 = arith.constant 0 : i32
    return %arg0, %c0_i32, %c0_i32_0 : i32, i32, i32
  }
  func.func @transform_2(%arg0: i32) -> (i32, i32) {
    %c0_i32 = arith.constant 0 : i32
    %c0_i32_0 = arith.constant 0 : i32
    %c0_i32_1 = arith.constant 0 : i32
    return %c0_i32, %c0_i32_0 : i32, i32
  }
  func.func @transform_3(%arg0: i32) -> (i32, i32) {
    %c0_i32 = arith.constant 0 : i32
    %c0_i32_0 = arith.constant 0 : i32
    %c0_i32_1 = arith.constant 0 : i32
    return %c0_i32, %c0_i32_0 : i32, i32
  }
  func.func @transform_4(%arg0: i32) -> (i32, i32) {
    %c0_i32 = arith.constant 0 : i32
    %c0_i32_0 = arith.constant 0 : i32
    %c0_i32_1 = arith.constant 0 : i32
    return %c0_i32, %c0_i32_0 : i32, i32
  }
  func.func @transform_5(%arg0: i32) -> (i32, i32) {
    %c0_i32 = arith.constant 0 : i32
    %c0_i32_0 = arith.constant 0 : i32
    return %arg0, %c0_i32 : i32, i32
  }
}

</mosaic_0001>

<llo_original>
// kernel: tpu_custom_call.1
$region0: #{tpu_custom_call.1}
  #allocation0 [shape = 'u32[]', space=smem, size = 0x4, offset = 0x4, fixed_abs, tag = 'smem constant byte address 0x4 - core index']
  #allocation1 [shape = 'u32[72,128]{1,0:T(1,128)}', space=vmem, size = 0x9000, scoped, tag = 'internal scratch']
  %s0 = inlined_call_operand.vmem [shape: f32[256,8], index: 0, kind: input, shape index: {}, may-alias: {0,5}]
  %s1 = inlined_call_operand.vmem [shape: f32[16,16,16], index: 1, kind: input, shape index: {}]
  %s2 = inlined_call_operand.vmem [shape: f32[8,16], index: 2, kind: input, shape index: {}]
  %s3 = inlined_call_operand.vmem [shape: f32[1,16], index: 3, kind: input, shape index: {}]
  %s4 = inlined_call_operand.vmem [shape: f32[16,8], index: 4, kind: input, shape index: {}]
  %s5 = inlined_call_operand.vmem [shape: f32[256,8], index: 5, kind: output, shape index: {}, may-alias: {0,5}]
  %s6 = sld [smem:[#allocation0]]
  $region53: #{tpu_custom_call.1} parent=0
    _
  %s8 = ssub.s32 1, %s6
  %s9 = scalar_select 0, %s8, %s6
  loop: start=0, step=1, limit=4
  $region2: #{tpu_custom_call.1} parent=0 // loop_pre_header
    _
  $region3: #{tpu_custom_call.1} parent=0 // loop_header
    %s11 = sphi 0, %s15
    %p12 = scmp.ge.s32.totalorder %s11, 4
    %s21 = sphi 0, %s23
    %s24 = sphi 0, %s21
    %s25 = sphi 0, %s24
    %s41 = sphi 0, %s25
    %s47 = sphi 0, %s49
    %s50 = sphi 0, %s47
    %s51 = sphi 0, %s50
    %s67 = sphi 0, %s51
    %s71 = sphi 0, %s71
    %s73 = sphi 0, %s71
    %s74 = sphi 0, %s73
    %s88 = sphi 0, %s74
    %s92 = sphi 0, %s92
    %s94 = sphi 0, %s92
    %s95 = sphi 0, %s94
    %s109 = sphi 0, %s95
    %s113 = sphi 0, %s113
    %s115 = sphi 0, %s113
    %s116 = sphi 0, %s115
    %s130 = sphi 0, %s116
    %s136 = sphi 0, %s138
    %s139 = sphi 0, %s136
    %s140 = sphi 0, %s139
    %s156 = sphi 0, %s140
  $region4: #{tpu_custom_call.1} parent=0 // loop_header_branch
    %14 = sbr.rel (%p12) target = $region8
  $region5: #{tpu_custom_call.1} parent=0 // loop_body
    %s16 = ssub.s32 %s11, 1
    %s17 = ssub.s32 %s11, 2
    %s18 = sadd.s32 %s11, 1
    %s19 = ssub.s32 %s11, %s18
    %p20 = scmp.eq.s32.totalorder %s19, 0
    %s22 = sadd.s32 %s21, 1
    %s23 = scalar_select %p20, %s21, %s22
    %p26 = pneg %p20
    %p27 = scmp.eq.s32.totalorder %s11, 1
    %p28 = por %p26, %p27
    %p29 = scmp.ne.s32.totalorder %s21, %s24
    %p30 = scmp.eq.s32.totalorder %s11, 0
    %p31 = por %p29, %p30
    %p32 = scmp.ne.s32.totalorder %s21, %s24
    %p33 = scmp.eq.s32.totalorder %s16, 1
    %p34 = por %p32, %p33
    %p35 = scmp.ne.s32.totalorder %s24, %s25
    %p36 = scmp.eq.s32.totalorder %s16, 0
    %p37 = por %p35, %p36
    %p38 = scmp.ne.s32.totalorder %s24, %s25
    %p39 = scmp.eq.s32.totalorder %s17, 1
    %p40 = por %p38, %p39
    %p42 = scmp.ne.s32.totalorder %s25, %s41
    %p43 = scmp.eq.s32.totalorder %s17, 0
    %p44 = por %p42, %p43
    %s45 = ssub.s32 %s11, %s18
    %p46 = scmp.eq.s32.totalorder %s45, 0
    %s48 = sadd.s32 %s47, 1
    %s49 = scalar_select %p46, %s47, %s48
    %p52 = pneg %p46
    %p53 = scmp.eq.s32.totalorder %s11, 1
    %p54 = por %p52, %p53
    %p55 = scmp.ne.s32.totalorder %s47, %s50
    %p56 = scmp.eq.s32.totalorder %s11, 0
    %p57 = por %p55, %p56
    %p58 = scmp.ne.s32.totalorder %s47, %s50
    %p59 = scmp.eq.s32.totalorder %s16, 1
    %p60 = por %p58, %p59
    %p61 = scmp.ne.s32.totalorder %s50, %s51
    %p62 = scmp.eq.s32.totalorder %s16, 0
    %p63 = por %p61, %p62
    %p64 = scmp.ne.s32.totalorder %s50, %s51
    %p65 = scmp.eq.s32.totalorder %s17, 1
    %p66 = por %p64, %p65
    %p68 = scmp.ne.s32.totalorder %s51, %s67
    %p69 = scmp.eq.s32.totalorder %s17, 0
    %p70 = por %p68, %p69
    %s72 = sadd.s32 %s71, 1
    %p75 = scmp.eq.s32.totalorder %s11, 1
    %p76 = scmp.ne.s32.totalorder %s71, %s73
    %p77 = scmp.eq.s32.totalorder %s11, 0
    %p78 = por %p76, %p77
    %p79 = scmp.ne.s32.totalorder %s71, %s73
    %p80 = scmp.eq.s32.totalorder %s16, 1
    %p81 = por %p79, %p80
    %p82 = scmp.ne.s32.totalorder %s73, %s74
    %p83 = scmp.eq.s32.totalorder %s16, 0
    %p84 = por %p82, %p83
    %p85 = scmp.ne.s32.totalorder %s73, %s74
    %p86 = scmp.eq.s32.totalorder %s17, 1
    %p87 = por %p85, %p86
    %p89 = scmp.ne.s32.totalorder %s74, %s88
    %p90 = scmp.eq.s32.totalorder %s17, 0
    %p91 = por %p89, %p90
    %s93 = sadd.s32 %s92, 1
    %p96 = scmp.eq.s32.totalorder %s11, 1
    %p97 = scmp.ne.s32.totalorder %s92, %s94
    %p98 = scmp.eq.s32.totalorder %s11, 0
    %p99 = por %p97, %p98
    %p100 = scmp.ne.s32.totalorder %s92, %s94
    %p101 = scmp.eq.s32.totalorder %s16, 1
    %p102 = por %p100, %p101
    %p103 = scmp.ne.s32.totalorder %s94, %s95
    %p104 = scmp.eq.s32.totalorder %s16, 0
    %p105 = por %p103, %p104
    %p106 = scmp.ne.s32.totalorder %s94, %s95
    %p107 = scmp.eq.s32.totalorder %s17, 1
    %p108 = por %p106, %p107
    %p110 = scmp.ne.s32.totalorder %s95, %s109
    %p111 = scmp.eq.s32.totalorder %s17, 0
    %p112 = por %p110, %p111
    %s114 = sadd.s32 %s113, 1
    %p117 = scmp.eq.s32.totalorder %s11, 1
    %p118 = scmp.ne.s32.totalorder %s113, %s115
    %p119 = scmp.eq.s32.totalorder %s11, 0
    %p120 = por %p118, %p119
    %p121 = scmp.ne.s32.totalorder %s113, %s115
    %p122 = scmp.eq.s32.totalorder %s16, 1
    %p123 = por %p121, %p122
    %p124 = scmp.ne.s32.totalorder %s115, %s116
    %p125 = scmp.eq.s32.totalorder %s16, 0
    %p126 = por %p124, %p125
    %p127 = scmp.ne.s32.totalorder %s115, %s116
    %p128 = scmp.eq.s32.totalorder %s17, 1
    %p129 = por %p127, %p128
    %p131 = scmp.ne.s32.totalorder %s116, %s130
    %p132 = scmp.eq.s32.totalorder %s17, 0
    %p133 = por %p131, %p132
    %s134 = ssub.s32 %s11, %s18
    %p135 = scmp.eq.s32.totalorder %s134, 0
    %s137 = sadd.s32 %s136, 1
    %s138 = scalar_select %p135, %s136, %s137
    %p141 = pneg %p135
    %p142 = scmp.eq.s32.totalorder %s11, 1
    %p143 = por %p141, %p142
    %p144 = scmp.ne.s32.totalorder %s136, %s139
    %p145 = scmp.eq.s32.totalorder %s11, 0
    %p146 = por %p144, %p145
    %p147 = scmp.ne.s32.totalorder %s136, %s139
    %p148 = scmp.eq.s32.totalorder %s16, 1
    %p149 = por %p147, %p148
    %p150 = scmp.ne.s32.totalorder %s139, %s140
    %p151 = scmp.eq.s32.totalorder %s16, 0
    %p152 = por %p150, %p151
    %p153 = scmp.ne.s32.totalorder %s139, %s140
    %p154 = scmp.eq.s32.totalorder %s17, 1
    %p155 = por %p153, %p154
    %p157 = scmp.ne.s32.totalorder %s140, %s156
    %p158 = scmp.eq.s32.totalorder %s17, 0
    %p159 = por %p157, %p158
    %p160 = scmp.le.s32.totalorder 1, %s11
    %p161 = scmp.lt.s32.totalorder %s11, 3
    %p162 = pnand %p160, %p161
    %p163 = pneg %p162
    // Predicated region
    $region9: #{tpu_custom_call.1} parent=5 // pred_check
      _
    $region10: #{tpu_custom_call.1} parent=5 // pred_check_branch
      %165 = sbr.rel (%p162) target = $region12
    $region11: #{tpu_custom_call.1} parent=5 // pred_region
      %s166 = ssub.s32 %s11, 1
      // Predicated region
      $region13: #{tpu_custom_call.1} parent=11 // pred_check
        %p167 = pneg %p84
      $region14: #{tpu_custom_call.1} parent=11 // pred_check_branch
        %169 = sbr.rel (%p167) target = $region16
      $region15: #{tpu_custom_call.1} parent=11 // pred_region
        _
      $region16: #{tpu_custom_call.1} parent=11 // pred_fallthru
        _
      // Predicated region
      $region17: #{tpu_custom_call.1} parent=11 // pred_check
        %p170 = pneg %p105
      $region18: #{tpu_custom_call.1} parent=11 // pred_check_branch
        %172 = sbr.rel (%p170) target = $region20
      $region19: #{tpu_custom_call.1} parent=11 // pred_region
        _
      $region20: #{tpu_custom_call.1} parent=11 // pred_fallthru
        _
      // Predicated region
      $region21: #{tpu_custom_call.1} parent=11 // pred_check
        %p173 = pneg %p126
      $region22: #{tpu_custom_call.1} parent=11 // pred_check_branch
        %175 = sbr.rel (%p173) target = $region24
      $region23: #{tpu_custom_call.1} parent=11 // pred_region
        _
      $region24: #{tpu_custom_call.1} parent=11 // pred_fallthru
        _
    $region12: #{tpu_custom_call.1} parent=5 // pred_fallthru
      _
    %p176 = scmp.lt.s32.totalorder %s11, 2
    // Predicated region
    $region25: #{tpu_custom_call.1} parent=5 // pred_check
      %p177 = pneg %p176
    $region26: #{tpu_custom_call.1} parent=5 // pred_check_branch
      %179 = sbr.rel (%p177) target = $region28
    $region27: #{tpu_custom_call.1} parent=5 // pred_region
      // Predicated region
      $region29: #{tpu_custom_call.1} parent=27 // pred_check
        %p180 = pneg %p31
      $region30: #{tpu_custom_call.1} parent=27 // pred_check_branch
        %182 = sbr.rel (%p180) target = $region32
      $region31: #{tpu_custom_call.1} parent=27 // pred_region
        %s183 = smul.u32 16, %s11
        %p184 = scmp.lt.s32.totalorder %s183, 31
        %s185 = scalar_select %p184, %s183, 31
        %s186 = smul.addr %s185, 8
        %s187 = scalar_lea.vmem %s0, %s186
        %s188 = smul.u32 16, %s11
      $region32: #{tpu_custom_call.1} parent=27 // pred_fallthru
        _
      // Predicated region
      $region33: #{tpu_custom_call.1} parent=27 // pred_check
        %p189 = pneg %p57
      $region34: #{tpu_custom_call.1} parent=27 // pred_check_branch
        %191 = sbr.rel (%p189) target = $region36
      $region35: #{tpu_custom_call.1} parent=27 // pred_region
        %s192 = smul.u32 8, %s11
        %p193 = scmp.lt.s32.totalorder %s192, 15
        %s194 = scalar_select %p193, %s192, 15
        %s195 = smul.addr %s194, 2
        %s196 = smul.addr %s195, 8
        %s197 = scalar_lea.vmem %s1, %s196
        %s198 = smul.u32 8, %s11
      $region36: #{tpu_custom_call.1} parent=27 // pred_fallthru
        _
    $region28: #{tpu_custom_call.1} parent=5 // pred_fallthru
      _
    %p199 = scmp.le.s32.totalorder 1, %s11
    %p200 = scmp.lt.s32.totalorder %s11, 3
    %p201 = pnand %p199, %p200
    %p202 = pneg %p201
    // Predicated region
    $region37: #{tpu_custom_call.1} parent=5 // pred_check
      _
    $region38: #{tpu_custom_call.1} parent=5 // pred_check_branch
      %204 = sbr.rel (%p201) target = $region40
    $region39: #{tpu_custom_call.1} parent=5 // pred_region
      %s205 = ssub.s32 %s11, 1
      %s206 = smul.u32 16, %s16
      %p207 = scmp.lt.s32.totalorder %s206, 31
      %s208 = scalar_select %p207, %s206, 31
      %s209 = smul.addr %s208, 8
      %s210 = scalar_lea.vmem %s0, %s209
      %p211 = pneg %p37
      %p212 = pneg %p34
      %s213 = smul.u32 8, %s16
      %p214 = scmp.lt.s32.totalorder %s213, 15
      %s215 = scalar_select %p214, %s213, 15
      %s216 = smul.addr %s215, 2
      %s217 = smul.addr %s216, 8
      %s218 = scalar_lea.vmem %s1, %s217
      %p219 = pneg %p63
      %p220 = pneg %p60
      %p221 = pneg %p84
      %p222 = pneg %p81
      %p223 = pneg %p105
      %p224 = pneg %p102
      %p225 = pneg %p126
      %p226 = pneg %p123
      %p227 = pneg %p152
      %p228 = pneg %p149
      %s229 = smul.u32 16, %s16
      %p230 = scmp.lt.s32.totalorder %s229, 31
      %s231 = scalar_select %p230, %s229, 31
      %s232 = smul.addr %s231, 8
      %s233 = scalar_lea.vmem %s5, %s232
      %s234 = smul.u32 16, %s16
      %p235 = scmp.lt.s32.totalorder %s234, 31
      %s236 = scalar_select %p235, %s234, 31
      %s237 = smul.addr %s236, 8
      %s238 = scalar_lea.vmem %s0, %s237
      %s239 = smul.u32 16, %s16
      %s240 = smul.u32 8, %s16
      %p241 = scmp.lt.s32.totalorder %s240, 15
      %s242 = scalar_select %p241, %s240, 15
      %s243 = smul.addr %s242, 2
      %s244 = smul.addr %s243, 8
      %s245 = scalar_lea.vmem %s1, %s244
      %s246 = smul.u32 8, %s16
      %s247 = smul.u32 16, %s16
      %p248 = scmp.lt.s32.totalorder %s247, 31
      %s249 = scalar_select %p248, %s247, 31
      %s250 = smul.addr %s249, 8
      %s251 = scalar_lea.vmem %s5, %s250
      %s252 = smul.u32 16, %s16
      %v253 = vld [vmem:[%s238] sm:$0xff]
      %v254 = vld [vmem:[%s238 + $0x8] sm:$0xff]
      %v255 = vld [vmem:[%s238 + $0x10] sm:$0xff]
      %v256 = vld [vmem:[%s238 + $0x18] sm:$0xff]
      %v257 = vld [vmem:[%s238 + $0x20] sm:$0xff]
      %v258 = vld [vmem:[%s238 + $0x28] sm:$0xff]
      %v259 = vld [vmem:[%s238 + $0x30] sm:$0xff]
      %v260 = vld [vmem:[%s238 + $0x38] sm:$0xff]
      %v261 = vld [vmem:[%s238 + $0x40] sm:$0xff]
      %v262 = vld [vmem:[%s238 + $0x48] sm:$0xff]
      %v263 = vld [vmem:[%s238 + $0x50] sm:$0xff]
      %v264 = vld [vmem:[%s238 + $0x58] sm:$0xff]
      %v265 = vld [vmem:[%s238 + $0x60] sm:$0xff]
      %v266 = vld [vmem:[%s238 + $0x68] sm:$0xff]
      %v267 = vld [vmem:[%s238 + $0x70] sm:$0xff]
      %v268 = vld [vmem:[%s238 + $0x78] sm:$0xff]
      %v269 = vld [vmem:[%s245] sm:$0xff]
      %v270 = vld [vmem:[%s245 + $0x8] sm:$0xff]
      %v271 = vld [vmem:[%s245 + $0x10] sm:$0xff]
      %v272 = vld [vmem:[%s245 + $0x18] sm:$0xff]
      %v273 = vld [vmem:[%s245 + $0x20] sm:$0xff]
      %v274 = vld [vmem:[%s245 + $0x28] sm:$0xff]
      %v275 = vld [vmem:[%s245 + $0x30] sm:$0xff]
      %v276 = vld [vmem:[%s245 + $0x38] sm:$0xff]
      %v277 = vld [vmem:[%s245 + $0x40] sm:$0xff]
      %v278 = vld [vmem:[%s245 + $0x48] sm:$0xff]
      %v279 = vld [vmem:[%s245 + $0x50] sm:$0xff]
      %v280 = vld [vmem:[%s245 + $0x58] sm:$0xff]
      %v281 = vld [vmem:[%s245 + $0x60] sm:$0xff]
      %v282 = vld [vmem:[%s245 + $0x68] sm:$0xff]
      %v283 = vld [vmem:[%s245 + $0x70] sm:$0xff]
      %v284 = vld [vmem:[%s245 + $0x78] sm:$0xff]
      %vm285 = vcmask 130048
      %v286 = vsel %vm285, %v269, 0.0
      %287 = vadd.xlane.f32.xlu0 %v286
      %v288 = vpop.xlane.xlu0 %287
      %v289 = vsel %vm285, %v270, 0.0
      %290 = vadd.xlane.f32.xlu0 %v289
      %v291 = vpop.xlane.xlu0 %290
      %v292 = vsel %vm285, %v271, 0.0
      %293 = vadd.xlane.f32.xlu0 %v292
      %v294 = vpop.xlane.xlu0 %293
      %v295 = vsel %vm285, %v272, 0.0
      %296 = vadd.xlane.f32.xlu0 %v295
      %v297 = vpop.xlane.xlu0 %296
      %v298 = vsel %vm285, %v273, 0.0
      %299 = vadd.xlane.f32.xlu0 %v298
      %v300 = vpop.xlane.xlu0 %299
      %v301 = vsel %vm285, %v274, 0.0
      %302 = vadd.xlane.f32.xlu0 %v301
      %v303 = vpop.xlane.xlu0 %302
      %v304 = vsel %vm285, %v275, 0.0
      %305 = vadd.xlane.f32.xlu0 %v304
      %v306 = vpop.xlane.xlu0 %305
      %v307 = vsel %vm285, %v276, 0.0
      %308 = vadd.xlane.f32.xlu0 %v307
      %v309 = vpop.xlane.xlu0 %308
      %v310 = vsel %vm285, %v277, 0.0
      %311 = vadd.xlane.f32.xlu0 %v310
      %v312 = vpop.xlane.xlu0 %311
      %v313 = vsel %vm285, %v278, 0.0
      %314 = vadd.xlane.f32.xlu0 %v313
      %v315 = vpop.xlane.xlu0 %314
      %v316 = vsel %vm285, %v279, 0.0
      %317 = vadd.xlane.f32.xlu0 %v316
      %v318 = vpop.xlane.xlu0 %317
      %v319 = vsel %vm285, %v280, 0.0
      %320 = vadd.xlane.f32.xlu0 %v319
      %v321 = vpop.xlane.xlu0 %320
      %v322 = vsel %vm285, %v281, 0.0
      %323 = vadd.xlane.f32.xlu0 %v322
      %v324 = vpop.xlane.xlu0 %323
      %v325 = vsel %vm285, %v282, 0.0
      %326 = vadd.xlane.f32.xlu0 %v325
      %v327 = vpop.xlane.xlu0 %326
      %v328 = vsel %vm285, %v283, 0.0
      %329 = vadd.xlane.f32.xlu0 %v328
      %v330 = vpop.xlane.xlu0 %329
      %v331 = vsel %vm285, %v284, 0.0
      %332 = vadd.xlane.f32.xlu0 %v331
      %v333 = vpop.xlane.xlu0 %332
      %v334 = vrcp.pop %v288
      %v335 = vmul.f32 %v288, %v334
      %v336 = vsub.f32 1.0, %v335
      %v337 = vmul.f32 %v334, %v336
      %v338 = vadd.f32 %v334, %v337
      %vm339 = vweird.f32 %v288
      %vm340 = vweird.f32 %v334
      %vm341 = vmor %vm339, %vm340
      %v342 = vsel %vm341, %v334, %v338
      %v343 = vand.u32 2147483647, %v288
      %vm344 = vcmp.eq.f32.partialorder %v343, 8.507059e+37
      %v345 = vand.u32 %v288, 2147483648
      %v346 = vor.u32 1.1754944e-38, %v345
      %v347 = vsel %vm344, %v346, %v342
      %v348 = vmul.f32 1.0, %v347
      %v349 = vrcp.pop %v291
      %v350 = vmul.f32 %v291, %v349
      %v351 = vsub.f32 1.0, %v350
      %v352 = vmul.f32 %v349, %v351
      %v353 = vadd.f32 %v349, %v352
      %vm354 = vweird.f32 %v291
      %vm355 = vweird.f32 %v349
      %vm356 = vmor %vm354, %vm355
      %v357 = vsel %vm356, %v349, %v353
      %v358 = vand.u32 2147483647, %v291
      %vm359 = vcmp.eq.f32.partialorder %v358, 8.507059e+37
      %v360 = vand.u32 %v291, 2147483648
      %v361 = vor.u32 1.1754944e-38, %v360
      %v362 = vsel %vm359, %v361, %v357
      %v363 = vmul.f32 1.0, %v362
      %v364 = vrcp.pop %v294
      %v365 = vmul.f32 %v294, %v364
      %v366 = vsub.f32 1.0, %v365
      %v367 = vmul.f32 %v364, %v366
      %v368 = vadd.f32 %v364, %v367
      %vm369 = vweird.f32 %v294
      %vm370 = vweird.f32 %v364
      %vm371 = vmor %vm369, %vm370
      %v372 = vsel %vm371, %v364, %v368
      %v373 = vand.u32 2147483647, %v294
      %vm374 = vcmp.eq.f32.partialorder %v373, 8.507059e+37
      %v375 = vand.u32 %v294, 2147483648
      %v376 = vor.u32 1.1754944e-38, %v375
      %v377 = vsel %vm374, %v376, %v372
      %v378 = vmul.f32 1.0, %v377
      %v379 = vrcp.pop %v297
      %v380 = vmul.f32 %v297, %v379
      %v381 = vsub.f32 1.0, %v380
      %v382 = vmul.f32 %v379, %v381
      %v383 = vadd.f32 %v379, %v382
      %vm384 = vweird.f32 %v297
      %vm385 = vweird.f32 %v379
      %vm386 = vmor %vm384, %vm385
      %v387 = vsel %vm386, %v379, %v383
      %v388 = vand.u32 2147483647, %v297
      %vm389 = vcmp.eq.f32.partialorder %v388, 8.507059e+37
      %v390 = vand.u32 %v297, 2147483648
      %v391 = vor.u32 1.1754944e-38, %v390
      %v392 = vsel %vm389, %v391, %v387
      %v393 = vmul.f32 1.0, %v392
      %v394 = vrcp.pop %v300
      %v395 = vmul.f32 %v300, %v394
      %v396 = vsub.f32 1.0, %v395
      %v397 = vmul.f32 %v394, %v396
      %v398 = vadd.f32 %v394, %v397
      %vm399 = vweird.f32 %v300
      %vm400 = vweird.f32 %v394
      %vm401 = vmor %vm399, %vm400
      %v402 = vsel %vm401, %v394, %v398
      %v403 = vand.u32 2147483647, %v300
      %vm404 = vcmp.eq.f32.partialorder %v403, 8.507059e+37
      %v405 = vand.u32 %v300, 2147483648
      %v406 = vor.u32 1.1754944e-38, %v405
      %v407 = vsel %vm404, %v406, %v402
      %v408 = vmul.f32 1.0, %v407
      %v409 = vrcp.pop %v303
      %v410 = vmul.f32 %v303, %v409
      %v411 = vsub.f32 1.0, %v410
      %v412 = vmul.f32 %v409, %v411
      %v413 = vadd.f32 %v409, %v412
      %vm414 = vweird.f32 %v303
      %vm415 = vweird.f32 %v409
      %vm416 = vmor %vm414, %vm415
      %v417 = vsel %vm416, %v409, %v413
      %v418 = vand.u32 2147483647, %v303
      %vm419 = vcmp.eq.f32.partialorder %v418, 8.507059e+37
      %v420 = vand.u32 %v303, 2147483648
      %v421 = vor.u32 1.1754944e-38, %v420
      %v422 = vsel %vm419, %v421, %v417
      %v423 = vmul.f32 1.0, %v422
      %v424 = vrcp.pop %v306
      %v425 = vmul.f32 %v306, %v424
      %v426 = vsub.f32 1.0, %v425
      %v427 = vmul.f32 %v424, %v426
      %v428 = vadd.f32 %v424, %v427
      %vm429 = vweird.f32 %v306
      %vm430 = vweird.f32 %v424
      %vm431 = vmor %vm429, %vm430
      %v432 = vsel %vm431, %v424, %v428
      %v433 = vand.u32 2147483647, %v306
      %vm434 = vcmp.eq.f32.partialorder %v433, 8.507059e+37
      %v435 = vand.u32 %v306, 2147483648
      %v436 = vor.u32 1.1754944e-38, %v435
      %v437 = vsel %vm434, %v436, %v432
      %v438 = vmul.f32 1.0, %v437
      %v439 = vrcp.pop %v309
      %v440 = vmul.f32 %v309, %v439
      %v441 = vsub.f32 1.0, %v440
      %v442 = vmul.f32 %v439, %v441
      %v443 = vadd.f32 %v439, %v442
      %vm444 = vweird.f32 %v309
      %vm445 = vweird.f32 %v439
      %vm446 = vmor %vm444, %vm445
      %v447 = vsel %vm446, %v439, %v443
      %v448 = vand.u32 2147483647, %v309
      %vm449 = vcmp.eq.f32.partialorder %v448, 8.507059e+37
      %v450 = vand.u32 %v309, 2147483648
      %v451 = vor.u32 1.1754944e-38, %v450
      %v452 = vsel %vm449, %v451, %v447
      %v453 = vmul.f32 1.0, %v452
      %v454 = vrcp.pop %v312
      %v455 = vmul.f32 %v312, %v454
      %v456 = vsub.f32 1.0, %v455
      %v457 = vmul.f32 %v454, %v456
      %v458 = vadd.f32 %v454, %v457
      %vm459 = vweird.f32 %v312
      %vm460 = vweird.f32 %v454
      %vm461 = vmor %vm459, %vm460
      %v462 = vsel %vm461, %v454, %v458
      %v463 = vand.u32 2147483647, %v312
      %vm464 = vcmp.eq.f32.partialorder %v463, 8.507059e+37
      %v465 = vand.u32 %v312, 2147483648
      %v466 = vor.u32 1.1754944e-38, %v465
      %v467 = vsel %vm464, %v466, %v462
      %v468 = vmul.f32 1.0, %v467
      %v469 = vrcp.pop %v315
      %v470 = vmul.f32 %v315, %v469
      %v471 = vsub.f32 1.0, %v470
      %v472 = vmul.f32 %v469, %v471
      %v473 = vadd.f32 %v469, %v472
      %vm474 = vweird.f32 %v315
      %vm475 = vweird.f32 %v469
      %vm476 = vmor %vm474, %vm475
      %v477 = vsel %vm476, %v469, %v473
      %v478 = vand.u32 2147483647, %v315
      %vm479 = vcmp.eq.f32.partialorder %v478, 8.507059e+37
      %v480 = vand.u32 %v315, 2147483648
      %v481 = vor.u32 1.1754944e-38, %v480
      %v482 = vsel %vm479, %v481, %v477
      %v483 = vmul.f32 1.0, %v482
      %v484 = vrcp.pop %v318
      %v485 = vmul.f32 %v318, %v484
      %v486 = vsub.f32 1.0, %v485
      %v487 = vmul.f32 %v484, %v486
      %v488 = vadd.f32 %v484, %v487
      %vm489 = vweird.f32 %v318
      %vm490 = vweird.f32 %v484
      %vm491 = vmor %vm489, %vm490
      %v492 = vsel %vm491, %v484, %v488
      %v493 = vand.u32 2147483647, %v318
      %vm494 = vcmp.eq.f32.partialorder %v493, 8.507059e+37
      %v495 = vand.u32 %v318, 2147483648
      %v496 = vor.u32 1.1754944e-38, %v495
      %v497 = vsel %vm494, %v496, %v492
      %v498 = vmul.f32 1.0, %v497
      %v499 = vrcp.pop %v321
      %v500 = vmul.f32 %v321, %v499
      %v501 = vsub.f32 1.0, %v500
      %v502 = vmul.f32 %v499, %v501
      %v503 = vadd.f32 %v499, %v502
      %vm504 = vweird.f32 %v321
      %vm505 = vweird.f32 %v499
      %vm506 = vmor %vm504, %vm505
      %v507 = vsel %vm506, %v499, %v503
      %v508 = vand.u32 2147483647, %v321
      %vm509 = vcmp.eq.f32.partialorder %v508, 8.507059e+37
      %v510 = vand.u32 %v321, 2147483648
      %v511 = vor.u32 1.1754944e-38, %v510
      %v512 = vsel %vm509, %v511, %v507
      %v513 = vmul.f32 1.0, %v512
      %v514 = vrcp.pop %v324
      %v515 = vmul.f32 %v324, %v514
      %v516 = vsub.f32 1.0, %v515
      %v517 = vmul.f32 %v514, %v516
      %v518 = vadd.f32 %v514, %v517
      %vm519 = vweird.f32 %v324
      %vm520 = vweird.f32 %v514
      %vm521 = vmor %vm519, %vm520
      %v522 = vsel %vm521, %v514, %v518
      %v523 = vand.u32 2147483647, %v324
      %vm524 = vcmp.eq.f32.partialorder %v523, 8.507059e+37
      %v525 = vand.u32 %v324, 2147483648
      %v526 = vor.u32 1.1754944e-38, %v525
      %v527 = vsel %vm524, %v526, %v522
      %v528 = vmul.f32 1.0, %v527
      %v529 = vrcp.pop %v327
      %v530 = vmul.f32 %v327, %v529
      %v531 = vsub.f32 1.0, %v530
      %v532 = vmul.f32 %v529, %v531
      %v533 = vadd.f32 %v529, %v532
      %vm534 = vweird.f32 %v327
      %vm535 = vweird.f32 %v529
      %vm536 = vmor %vm534, %vm535
      %v537 = vsel %vm536, %v529, %v533
      %v538 = vand.u32 2147483647, %v327
      %vm539 = vcmp.eq.f32.partialorder %v538, 8.507059e+37
      %v540 = vand.u32 %v327, 2147483648
      %v541 = vor.u32 1.1754944e-38, %v540
      %v542 = vsel %vm539, %v541, %v537
      %v543 = vmul.f32 1.0, %v542
      %v544 = vrcp.pop %v330
      %v545 = vmul.f32 %v330, %v544
      %v546 = vsub.f32 1.0, %v545
      %v547 = vmul.f32 %v544, %v546
      %v548 = vadd.f32 %v544, %v547
      %vm549 = vweird.f32 %v330
      %vm550 = vweird.f32 %v544
      %vm551 = vmor %vm549, %vm550
      %v552 = vsel %vm551, %v544, %v548
      %v553 = vand.u32 2147483647, %v330
      %vm554 = vcmp.eq.f32.partialorder %v553, 8.507059e+37
      %v555 = vand.u32 %v330, 2147483648
      %v556 = vor.u32 1.1754944e-38, %v555
      %v557 = vsel %vm554, %v556, %v552
      %v558 = vmul.f32 1.0, %v557
      %v559 = vrcp.pop %v333
      %v560 = vmul.f32 %v333, %v559
      %v561 = vsub.f32 1.0, %v560
      %v562 = vmul.f32 %v559, %v561
      %v563 = vadd.f32 %v559, %v562
      %vm564 = vweird.f32 %v333
      %vm565 = vweird.f32 %v559
      %vm566 = vmor %vm564, %vm565
      %v567 = vsel %vm566, %v559, %v563
      %v568 = vand.u32 2147483647, %v333
      %vm569 = vcmp.eq.f32.partialorder %v568, 8.507059e+37
      %v570 = vand.u32 %v333, 2147483648
      %v571 = vor.u32 1.1754944e-38, %v570
      %v572 = vsel %vm569, %v571, %v567
      %v573 = vmul.f32 1.0, %v572
      %v575 = vsel %vm285, %v269, 0
      %v578 = vsel %vm285, %v270, 0
      %580 = vmatpush.msra.mxu0 0.0
      %581 = vmatpush.msra.mxu0 0.0
      %582 = vmatpush.msra.mxu0 0.0
      %583 = vmatpush.msra.mxu0 0.0
      %584 = vmatpush.msra.mxu0 0.0
      %585 = vmatpush.msra.mxu0 0.0
      %586 = vmatpush.msra.mxu0 0.0
      %587 = vmatpush.msra.mxu0 0.0
      %588 = vmatpush.msra.mxu0 0.0
      %589 = vmatpush.msra.mxu0 0.0
      %590 = vmatpush.msra.mxu0 0.0
      %591 = vmatpush.msra.mxu0 0.0
      %592 = vmatpush.msra.mxu0 0.0
      %593 = vmatpush.msra.mxu0 0.0
      %594 = vmatpush.msra.mxu0 %v254
      %595 = vmatpush.msra.mxu0 %v253
      %596 = vmatmul.f32.gmra.mxu0 %v575
      %v597 = vpop.f32.mrf.mxu0
      %v598 = vadd.f32 0.0, %v597
      %599 = vmatmul.f32.gmra.mxu0 %v578
      %v600 = vpop.f32.mrf.mxu0
      %v601 = vadd.f32 0.0, %v600
      %602 = vdwg.mxu0
      %v604 = vsel %vm285, %v271, 0
      %v607 = vsel %vm285, %v272, 0
      %609 = vmatpush.msra.mxu0 0.0
      %610 = vmatpush.msra.mxu0 0.0
      %611 = vmatpush.msra.mxu0 0.0
      %612 = vmatpush.msra.mxu0 0.0
      %613 = vmatpush.msra.mxu0 0.0
      %614 = vmatpush.msra.mxu0 0.0
      %615 = vmatpush.msra.mxu0 0.0
      %616 = vmatpush.msra.mxu0 0.0
      %617 = vmatpush.msra.mxu0 0.0
      %618 = vmatpush.msra.mxu0 0.0
      %619 = vmatpush.msra.mxu0 0.0
      %620 = vmatpush.msra.mxu0 0.0
      %621 = vmatpush.msra.mxu0 0.0
      %622 = vmatpush.msra.mxu0 0.0
      %623 = vmatpush.msra.mxu0 %v256
      %624 = vmatpush.msra.mxu0 %v255
      %625 = vmatmul.f32.gmra.mxu0 %v604
      %v626 = vpop.f32.mrf.mxu0
      %v627 = vadd.f32 0.0, %v626
      %628 = vmatmul.f32.gmra.mxu0 %v607
      %v629 = vpop.f32.mrf.mxu0
      %v630 = vadd.f32 0.0, %v629
      %631 = vdwg.mxu0
      %v633 = vsel %vm285, %v273, 0
      %v636 = vsel %vm285, %v274, 0
      %638 = vmatpush.msra.mxu0 0.0
      %639 = vmatpush.msra.mxu0 0.0
      %640 = vmatpush.msra.mxu0 0.0
      %641 = vmatpush.msra.mxu0 0.0
      %642 = vmatpush.msra.mxu0 0.0
      %643 = vmatpush.msra.mxu0 0.0
      %644 = vmatpush.msra.mxu0 0.0
      %645 = vmatpush.msra.mxu0 0.0
      %646 = vmatpush.msra.mxu0 0.0
      %647 = vmatpush.msra.mxu0 0.0
      %648 = vmatpush.msra.mxu0 0.0
      %649 = vmatpush.msra.mxu0 0.0
      %650 = vmatpush.msra.mxu0 0.0
      %651 = vmatpush.msra.mxu0 0.0
      %652 = vmatpush.msra.mxu0 %v258
      %653 = vmatpush.msra.mxu0 %v257
      %654 = vmatmul.f32.gmra.mxu0 %v633
      %v655 = vpop.f32.mrf.mxu0
      %v656 = vadd.f32 0.0, %v655
      %657 = vmatmul.f32.gmra.mxu0 %v636
      %v658 = vpop.f32.mrf.mxu0
      %v659 = vadd.f32 0.0, %v658
      %660 = vdwg.mxu0
      %v662 = vsel %vm285, %v275, 0
      %v665 = vsel %vm285, %v276, 0
      %667 = vmatpush.msra.mxu0 0.0
      %668 = vmatpush.msra.mxu0 0.0
      %669 = vmatpush.msra.mxu0 0.0
      %670 = vmatpush.msra.mxu0 0.0
      %671 = vmatpush.msra.mxu0 0.0
      %672 = vmatpush.msra.mxu0 0.0
      %673 = vmatpush.msra.mxu0 0.0
      %674 = vmatpush.msra.mxu0 0.0
      %675 = vmatpush.msra.mxu0 0.0
      %676 = vmatpush.msra.mxu0 0.0
      %677 = vmatpush.msra.mxu0 0.0
      %678 = vmatpush.msra.mxu0 0.0
      %679 = vmatpush.msra.mxu0 0.0
      %680 = vmatpush.msra.mxu0 0.0
      %681 = vmatpush.msra.mxu0 %v260
      %682 = vmatpush.msra.mxu0 %v259
      %683 = vmatmul.f32.gmra.mxu0 %v662
      %v684 = vpop.f32.mrf.mxu0
      %v685 = vadd.f32 0.0, %v684
      %686 = vmatmul.f32.gmra.mxu0 %v665
      %v687 = vpop.f32.mrf.mxu0
      %v688 = vadd.f32 0.0, %v687
      %689 = vdwg.mxu0
      %v691 = vsel %vm285, %v277, 0
      %v694 = vsel %vm285, %v278, 0
      %696 = vmatpush.msra.mxu0 0.0
      %697 = vmatpush.msra.mxu0 0.0
      %698 = vmatpush.msra.mxu0 0.0
      %699 = vmatpush.msra.mxu0 0.0
      %700 = vmatpush.msra.mxu0 0.0
      %701 = vmatpush.msra.mxu0 0.0
      %702 = vmatpush.msra.mxu0 0.0
      %703 = vmatpush.msra.mxu0 0.0
      %704 = vmatpush.msra.mxu0 0.0
      %705 = vmatpush.msra.mxu0 0.0
      %706 = vmatpush.msra.mxu0 0.0
      %707 = vmatpush.msra.mxu0 0.0
      %708 = vmatpush.msra.mxu0 0.0
      %709 = vmatpush.msra.mxu0 0.0
      %710 = vmatpush.msra.mxu0 %v262
      %711 = vmatpush.msra.mxu0 %v261
      %712 = vmatmul.f32.gmra.mxu0 %v691
      %v713 = vpop.f32.mrf.mxu0
      %v714 = vadd.f32 0.0, %v713
      %715 = vmatmul.f32.gmra.mxu0 %v694
      %v716 = vpop.f32.mrf.mxu0
      %v717 = vadd.f32 0.0, %v716
      %718 = vdwg.mxu0
      %v720 = vsel %vm285, %v279, 0
      %v723 = vsel %vm285, %v280, 0
      %725 = vmatpush.msra.mxu0 0.0
      %726 = vmatpush.msra.mxu0 0.0
      %727 = vmatpush.msra.mxu0 0.0
      %728 = vmatpush.msra.mxu0 0.0
      %729 = vmatpush.msra.mxu0 0.0
      %730 = vmatpush.msra.mxu0 0.0
      %731 = vmatpush.msra.mxu0 0.0
      %732 = vmatpush.msra.mxu0 0.0
      %733 = vmatpush.msra.mxu0 0.0
      %734 = vmatpush.msra.mxu0 0.0
      %735 = vmatpush.msra.mxu0 0.0
      %736 = vmatpush.msra.mxu0 0.0
      %737 = vmatpush.msra.mxu0 0.0
      %738 = vmatpush.msra.mxu0 0.0
      %739 = vmatpush.msra.mxu0 %v264
      %740 = vmatpush.msra.mxu0 %v263
      %741 = vmatmul.f32.gmra.mxu0 %v720
      %v742 = vpop.f32.mrf.mxu0
      %v743 = vadd.f32 0.0, %v742
      %744 = vmatmul.f32.gmra.mxu0 %v723
      %v745 = vpop.f32.mrf.mxu0
      %v746 = vadd.f32 0.0, %v745
      %747 = vdwg.mxu0
      %v749 = vsel %vm285, %v281, 0
      %v752 = vsel %vm285, %v282, 0
      %754 = vmatpush.msra.mxu0 0.0
      %755 = vmatpush.msra.mxu0 0.0
      %756 = vmatpush.msra.mxu0 0.0
      %757 = vmatpush.msra.mxu0 0.0
      %758 = vmatpush.msra.mxu0 0.0
      %759 = vmatpush.msra.mxu0 0.0
      %760 = vmatpush.msra.mxu0 0.0
      %761 = vmatpush.msra.mxu0 0.0
      %762 = vmatpush.msra.mxu0 0.0
      %763 = vmatpush.msra.mxu0 0.0
      %764 = vmatpush.msra.mxu0 0.0
      %765 = vmatpush.msra.mxu0 0.0
      %766 = vmatpush.msra.mxu0 0.0
      %767 = vmatpush.msra.mxu0 0.0
      %768 = vmatpush.msra.mxu0 %v266
      %769 = vmatpush.msra.mxu0 %v265
      %770 = vmatmul.f32.gmra.mxu0 %v749
      %v771 = vpop.f32.mrf.mxu0
      %v772 = vadd.f32 0.0, %v771
      %773 = vmatmul.f32.gmra.mxu0 %v752
      %v774 = vpop.f32.mrf.mxu0
      %v775 = vadd.f32 0.0, %v774
      %776 = vdwg.mxu0
      %v778 = vsel %vm285, %v283, 0
      %v781 = vsel %vm285, %v284, 0
      %783 = vmatpush.msra.mxu0 0.0
      %784 = vmatpush.msra.mxu0 0.0
      %785 = vmatpush.msra.mxu0 0.0
      %786 = vmatpush.msra.mxu0 0.0
      %787 = vmatpush.msra.mxu0 0.0
      %788 = vmatpush.msra.mxu0 0.0
      %789 = vmatpush.msra.mxu0 0.0
      %790 = vmatpush.msra.mxu0 0.0
      %791 = vmatpush.msra.mxu0 0.0
      %792 = vmatpush.msra.mxu0 0.0
      %793 = vmatpush.msra.mxu0 0.0
      %794 = vmatpush.msra.mxu0 0.0
      %795 = vmatpush.msra.mxu0 0.0
      %796 = vmatpush.msra.mxu0 0.0
      %797 = vmatpush.msra.mxu0 %v268
      %798 = vmatpush.msra.mxu0 %v267
      %799 = vmatmul.f32.gmra.mxu0 %v778
      %v800 = vpop.f32.mrf.mxu0
      %v801 = vadd.f32 0.0, %v800
      %802 = vmatmul.f32.gmra.mxu0 %v781
      %v803 = vpop.f32.mrf.mxu0
      %v804 = vadd.f32 0.0, %v803
      %805 = vdwg.mxu0
      %v806 = vmul.f32 %v598, %v348
      %v807 = vmul.f32 %v601, %v363
      %v808 = vmul.f32 %v627, %v378
      %v809 = vmul.f32 %v630, %v393
      %v810 = vmul.f32 %v656, %v408
      %v811 = vmul.f32 %v659, %v423
      %v812 = vmul.f32 %v685, %v438
      %v813 = vmul.f32 %v688, %v453
      %v814 = vmul.f32 %v714, %v468
      %v815 = vmul.f32 %v717, %v483
      %v816 = vmul.f32 %v743, %v498
      %v817 = vmul.f32 %v746, %v513
      %v818 = vmul.f32 %v772, %v528
      %v819 = vmul.f32 %v775, %v543
      %v820 = vmul.f32 %v801, %v558
      %v821 = vmul.f32 %v804, %v573
      %v822 = vld [vmem:[%s2] sm:$0xff]
      %v823 = vld [vmem:[%s3] sm:$0x1]
      %v825 = vperm.slane %v823, 0
      %vm827 = vcmask 64512
      %v829 = vsel %vm827, %v806, 0
      %v832 = vsel %vm827, %v807, 0
      %v835 = vsel %vm827, %v808, 0
      %v838 = vsel %vm827, %v809, 0
      %v841 = vsel %vm827, %v810, 0
      %v844 = vsel %vm827, %v811, 0
      %v847 = vsel %vm827, %v812, 0
      %v850 = vsel %vm827, %v813, 0
      %v853 = vsel %vm827, %v814, 0
      %v856 = vsel %vm827, %v815, 0
      %v859 = vsel %vm827, %v816, 0
      %v862 = vsel %vm827, %v817, 0
      %v865 = vsel %vm827, %v818, 0
      %v868 = vsel %vm827, %v819, 0
      %v871 = vsel %vm827, %v820, 0
      %v874 = vsel %vm827, %v821, 0
      %876 = vmatpush.msra.mxu0 0.0
      %877 = vmatpush.msra.mxu0 0.0
      %878 = vmatpush.msra.mxu0 0.0
      %879 = vmatpush.msra.mxu0 0.0
      %880 = vmatpush.msra.mxu0 0.0
      %881 = vmatpush.msra.mxu0 0.0
      %882 = vmatpush.msra.mxu0 0.0
      %883 = vmatpush.msra.mxu0 0.0
      %884 = vmatpush.msra.mxu0 0.0
      %885 = vmatpush.msra.mxu0 0.0
      %886 = vmatpush.msra.mxu0 0.0
      %887 = vmatpush.msra.mxu0 0.0
      %888 = vmatpush.msra.mxu0 0.0
      %889 = vmatpush.msra.mxu0 0.0
      %890 = vmatpush.msra.mxu0 0.0
      %891 = vmatpush.msra.mxu0 %v822
      %892 = vmatmul.f32.gmra.mxu0 %v829
      %v893 = vpop.f32.mrf.mxu0
      %v894 = vadd.f32 %v825, %v893
      %895 = vmatmul.f32.gmra.mxu0 %v832
      %v896 = vpop.f32.mrf.mxu0
      %v897 = vadd.f32 %v825, %v896
      %898 = vmatmul.f32.gmra.mxu0 %v835
      %v899 = vpop.f32.mrf.mxu0
      %v900 = vadd.f32 %v825, %v899
      %901 = vmatmul.f32.gmra.mxu0 %v838
      %v902 = vpop.f32.mrf.mxu0
      %v903 = vadd.f32 %v825, %v902
      %904 = vmatmul.f32.gmra.mxu0 %v841
      %v905 = vpop.f32.mrf.mxu0
      %v906 = vadd.f32 %v825, %v905
      %907 = vmatmul.f32.gmra.mxu0 %v844
      %v908 = vpop.f32.mrf.mxu0
      %v909 = vadd.f32 %v825, %v908
      %910 = vmatmul.f32.gmra.mxu0 %v847
      %v911 = vpop.f32.mrf.mxu0
      %v912 = vadd.f32 %v825, %v911
      %913 = vmatmul.f32.gmra.mxu0 %v850
      %v914 = vpop.f32.mrf.mxu0
      %v915 = vadd.f32 %v825, %v914
      %916 = vmatmul.f32.gmra.mxu0 %v853
      %v917 = vpop.f32.mrf.mxu0
      %v918 = vadd.f32 %v825, %v917
      %919 = vmatmul.f32.gmra.mxu0 %v856
      %v920 = vpop.f32.mrf.mxu0
      %v921 = vadd.f32 %v825, %v920
      %922 = vmatmul.f32.gmra.mxu0 %v859
      %v923 = vpop.f32.mrf.mxu0
      %v924 = vadd.f32 %v825, %v923
      %925 = vmatmul.f32.gmra.mxu0 %v862
      %v926 = vpop.f32.mrf.mxu0
      %v927 = vadd.f32 %v825, %v926
      %928 = vmatmul.f32.gmra.mxu0 %v865
      %v929 = vpop.f32.mrf.mxu0
      %v930 = vadd.f32 %v825, %v929
      %931 = vmatmul.f32.gmra.mxu0 %v868
      %v932 = vpop.f32.mrf.mxu0
      %v933 = vadd.f32 %v825, %v932
      %934 = vmatmul.f32.gmra.mxu0 %v871
      %v935 = vpop.f32.mrf.mxu0
      %v936 = vadd.f32 %v825, %v935
      %937 = vmatmul.f32.gmra.mxu0 %v874
      %v938 = vpop.f32.mrf.mxu0
      %v939 = vadd.f32 %v825, %v938
      %940 = vdwg.mxu0
      %v941 = vadd.f32 %v894, 3.0
      %v942 = vadd.f32 %v897, 3.0
      %v943 = vadd.f32 %v900, 3.0
      %v944 = vadd.f32 %v903, 3.0
      %v945 = vadd.f32 %v906, 3.0
      %v946 = vadd.f32 %v909, 3.0
      %v947 = vadd.f32 %v912, 3.0
      %v948 = vadd.f32 %v915, 3.0
      %v949 = vadd.f32 %v918, 3.0
      %v950 = vadd.f32 %v921, 3.0
      %v951 = vadd.f32 %v924, 3.0
      %v952 = vadd.f32 %v927, 3.0
      %v953 = vadd.f32 %v930, 3.0
      %v954 = vadd.f32 %v933, 3.0
      %v955 = vadd.f32 %v936, 3.0
      %v956 = vadd.f32 %v939, 3.0
      %v957 = vmax.f32 %v941, 0.0
      %v958 = vmax.f32 %v942, 0.0
      %v959 = vmax.f32 %v943, 0.0
      %v960 = vmax.f32 %v944, 0.0
      %v961 = vmax.f32 %v945, 0.0
      %v962 = vmax.f32 %v946, 0.0
      %v963 = vmax.f32 %v947, 0.0
      %v964 = vmax.f32 %v948, 0.0
      %v965 = vmax.f32 %v949, 0.0
      %v966 = vmax.f32 %v950, 0.0
      %v967 = vmax.f32 %v951, 0.0
      %v968 = vmax.f32 %v952, 0.0
      %v969 = vmax.f32 %v953, 0.0
      %v970 = vmax.f32 %v954, 0.0
      %v971 = vmax.f32 %v955, 0.0
      %v972 = vmax.f32 %v956, 0.0
      %v973 = vmin.f32 %v957, 6.0
      %v974 = vmin.f32 %v958, 6.0
      %v975 = vmin.f32 %v959, 6.0
      %v976 = vmin.f32 %v960, 6.0
      %v977 = vmin.f32 %v961, 6.0
      %v978 = vmin.f32 %v962, 6.0
      %v979 = vmin.f32 %v963, 6.0
      %v980 = vmin.f32 %v964, 6.0
      %v981 = vmin.f32 %v965, 6.0
      %v982 = vmin.f32 %v966, 6.0
      %v983 = vmin.f32 %v967, 6.0
      %v984 = vmin.f32 %v968, 6.0
      %v985 = vmin.f32 %v969, 6.0
      %v986 = vmin.f32 %v970, 6.0
      %v987 = vmin.f32 %v971, 6.0
      %v988 = vmin.f32 %v972, 6.0
      %v989 = vrcp.pop 3.0
      %v990 = vmul.f32 3.0, %v989
      %v991 = vsub.f32 1.0, %v990
      %v992 = vmul.f32 %v989, %v991
      %v993 = vadd.f32 %v989, %v992
      %vm994 = vweird.f32 %v989
      %v995 = vsel %vm994, %v989, %v993
      %v996 = vmul.f32 %v973, %v995
      %v997 = vmul.f32 %v974, %v995
      %v998 = vmul.f32 %v975, %v995
      %v999 = vmul.f32 %v976, %v995
      %v1000 = vmul.f32 %v977, %v995
      %v1001 = vmul.f32 %v978, %v995
      %v1002 = vmul.f32 %v979, %v995
      %v1003 = vmul.f32 %v980, %v995
      %v1004 = vmul.f32 %v981, %v995
      %v1005 = vmul.f32 %v982, %v995
      %v1006 = vmul.f32 %v983, %v995
      %v1007 = vmul.f32 %v984, %v995
      %v1008 = vmul.f32 %v985, %v995
      %v1009 = vmul.f32 %v986, %v995
      %v1010 = vmul.f32 %v987, %v995
      %v1011 = vmul.f32 %v988, %v995
      %v1012 = vsub.f32 %v996, 1.0
      %v1013 = vsub.f32 %v997, 1.0
      %v1014 = vsub.f32 %v998, 1.0
      %v1015 = vsub.f32 %v999, 1.0
      %v1016 = vsub.f32 %v1000, 1.0
      %v1017 = vsub.f32 %v1001, 1.0
      %v1018 = vsub.f32 %v1002, 1.0
      %v1019 = vsub.f32 %v1003, 1.0
      %v1020 = vsub.f32 %v1004, 1.0
      %v1021 = vsub.f32 %v1005, 1.0
      %v1022 = vsub.f32 %v1006, 1.0
      %v1023 = vsub.f32 %v1007, 1.0
      %v1024 = vsub.f32 %v1008, 1.0
      %v1025 = vsub.f32 %v1009, 1.0
      %v1026 = vsub.f32 %v1010, 1.0
      %v1027 = vsub.f32 %v1011, 1.0
      %1028 = vmatpush.msra.mxu0 0.0
      %1029 = vmatpush.msra.mxu0 0.0
      %1030 = vmatpush.msra.mxu0 0.0
      %1031 = vmatpush.msra.mxu0 0.0
      %1032 = vmatpush.msra.mxu0 0.0
      %1033 = vmatpush.msra.mxu0 0.0
      %1034 = vmatpush.msra.mxu0 0.0
      %1035 = vmatpush.msra.mxu0 0.0
      %1036 = vmatpush.msra.mxu0 0.0
      %1037 = vmatpush.msra.mxu0 0.0
      %1038 = vmatpush.msra.mxu0 0.0
      %1039 = vmatpush.msra.mxu0 0.0
      %1040 = vmatpush.msra.mxu0 0.0
      %1041 = vmatpush.msra.mxu0 0.0
      %1042 = vmatpush.msra.mxu0 %v1013
      %1043 = vmatpush.msra.mxu0 %v1012
      %1044 = vmatmul.f32.gmra.mxu0 %v575
      %v1045 = vpop.f32.mrf.mxu0
      %v1046 = vadd.f32 0.0, %v1045
      %1047 = vmatmul.f32.gmra.mxu0 %v578
      %v1048 = vpop.f32.mrf.mxu0
      %v1049 = vadd.f32 0.0, %v1048
      %1050 = vdwg.mxu0
      %1051 = vmatpush.msra.mxu0 0.0
      %1052 = vmatpush.msra.mxu0 0.0
      %1053 = vmatpush.msra.mxu0 0.0
      %1054 = vmatpush.msra.mxu0 0.0
      %1055 = vmatpush.msra.mxu0 0.0
      %1056 = vmatpush.msra.mxu0 0.0
      %1057 = vmatpush.msra.mxu0 0.0
      %1058 = vmatpush.msra.mxu0 0.0
      %1059 = vmatpush.msra.mxu0 0.0
      %1060 = vmatpush.msra.mxu0 0.0
      %1061 = vmatpush.msra.mxu0 0.0
      %1062 = vmatpush.msra.mxu0 0.0
      %1063 = vmatpush.msra.mxu0 0.0
      %1064 = vmatpush.msra.mxu0 0.0
      %1065 = vmatpush.msra.mxu0 %v1015
      %1066 = vmatpush.msra.mxu0 %v1014
      %1067 = vmatmul.f32.gmra.mxu0 %v604
      %v1068 = vpop.f32.mrf.mxu0
      %v1069 = vadd.f32 0.0, %v1068
      %1070 = vmatmul.f32.gmra.mxu0 %v607
      %v1071 = vpop.f32.mrf.mxu0
      %v1072 = vadd.f32 0.0, %v1071
      %1073 = vdwg.mxu0
      %1074 = vmatpush.msra.mxu0 0.0
      %1075 = vmatpush.msra.mxu0 0.0
      %1076 = vmatpush.msra.mxu0 0.0
      %1077 = vmatpush.msra.mxu0 0.0
      %1078 = vmatpush.msra.mxu0 0.0
      %1079 = vmatpush.msra.mxu0 0.0
      %1080 = vmatpush.msra.mxu0 0.0
      %1081 = vmatpush.msra.mxu0 0.0
      %1082 = vmatpush.msra.mxu0 0.0
      %1083 = vmatpush.msra.mxu0 0.0
      %1084 = vmatpush.msra.mxu0 0.0
      %1085 = vmatpush.msra.mxu0 0.0
      %1086 = vmatpush.msra.mxu0 0.0
      %1087 = vmatpush.msra.mxu0 0.0
      %1088 = vmatpush.msra.mxu0 %v1017
      %1089 = vmatpush.msra.mxu0 %v1016
      %1090 = vmatmul.f32.gmra.mxu0 %v633
      %v1091 = vpop.f32.mrf.mxu0
      %v1092 = vadd.f32 0.0, %v1091
      %1093 = vmatmul.f32.gmra.mxu0 %v636
      %v1094 = vpop.f32.mrf.mxu0
      %v1095 = vadd.f32 0.0, %v1094
      %1096 = vdwg.mxu0
      %1097 = vmatpush.msra.mxu0 0.0
      %1098 = vmatpush.msra.mxu0 0.0
      %1099 = vmatpush.msra.mxu0 0.0
      %1100 = vmatpush.msra.mxu0 0.0
      %1101 = vmatpush.msra.mxu0 0.0
      %1102 = vmatpush.msra.mxu0 0.0
      %1103 = vmatpush.msra.mxu0 0.0
      %1104 = vmatpush.msra.mxu0 0.0
      %1105 = vmatpush.msra.mxu0 0.0
      %1106 = vmatpush.msra.mxu0 0.0
      %1107 = vmatpush.msra.mxu0 0.0
      %1108 = vmatpush.msra.mxu0 0.0
      %1109 = vmatpush.msra.mxu0 0.0
      %1110 = vmatpush.msra.mxu0 0.0
      %1111 = vmatpush.msra.mxu0 %v1019
      %1112 = vmatpush.msra.mxu0 %v1018
      %1113 = vmatmul.f32.gmra.mxu0 %v662
      %v1114 = vpop.f32.mrf.mxu0
      %v1115 = vadd.f32 0.0, %v1114
      %1116 = vmatmul.f32.gmra.mxu0 %v665
      %v1117 = vpop.f32.mrf.mxu0
      %v1118 = vadd.f32 0.0, %v1117
      %1119 = vdwg.mxu0
      %1120 = vmatpush.msra.mxu0 0.0
      %1121 = vmatpush.msra.mxu0 0.0
      %1122 = vmatpush.msra.mxu0 0.0
      %1123 = vmatpush.msra.mxu0 0.0
      %1124 = vmatpush.msra.mxu0 0.0
      %1125 = vmatpush.msra.mxu0 0.0
      %1126 = vmatpush.msra.mxu0 0.0
      %1127 = vmatpush.msra.mxu0 0.0
      %1128 = vmatpush.msra.mxu0 0.0
      %1129 = vmatpush.msra.mxu0 0.0
      %1130 = vmatpush.msra.mxu0 0.0
      %1131 = vmatpush.msra.mxu0 0.0
      %1132 = vmatpush.msra.mxu0 0.0
      %1133 = vmatpush.msra.mxu0 0.0
      %1134 = vmatpush.msra.mxu0 %v1021
      %1135 = vmatpush.msra.mxu0 %v1020
      %1136 = vmatmul.f32.gmra.mxu0 %v691
      %v1137 = vpop.f32.mrf.mxu0
      %v1138 = vadd.f32 0.0, %v1137
      %1139 = vmatmul.f32.gmra.mxu0 %v694
      %v1140 = vpop.f32.mrf.mxu0
      %v1141 = vadd.f32 0.0, %v1140
      %1142 = vdwg.mxu0
      %1143 = vmatpush.msra.mxu0 0.0
      %1144 = vmatpush.msra.mxu0 0.0
      %1145 = vmatpush.msra.mxu0 0.0
      %1146 = vmatpush.msra.mxu0 0.0
      %1147 = vmatpush.msra.mxu0 0.0
      %1148 = vmatpush.msra.mxu0 0.0
      %1149 = vmatpush.msra.mxu0 0.0
      %1150 = vmatpush.msra.mxu0 0.0
      %1151 = vmatpush.msra.mxu0 0.0
      %1152 = vmatpush.msra.mxu0 0.0
      %1153 = vmatpush.msra.mxu0 0.0
      %1154 = vmatpush.msra.mxu0 0.0
      %1155 = vmatpush.msra.mxu0 0.0
      %1156 = vmatpush.msra.mxu0 0.0
      %1157 = vmatpush.msra.mxu0 %v1023
      %1158 = vmatpush.msra.mxu0 %v1022
      %1159 = vmatmul.f32.gmra.mxu0 %v720
      %v1160 = vpop.f32.mrf.mxu0
      %v1161 = vadd.f32 0.0, %v1160
      %1162 = vmatmul.f32.gmra.mxu0 %v723
      %v1163 = vpop.f32.mrf.mxu0
      %v1164 = vadd.f32 0.0, %v1163
      %1165 = vdwg.mxu0
      %1166 = vmatpush.msra.mxu0 0.0
      %1167 = vmatpush.msra.mxu0 0.0
      %1168 = vmatpush.msra.mxu0 0.0
      %1169 = vmatpush.msra.mxu0 0.0
      %1170 = vmatpush.msra.mxu0 0.0
      %1171 = vmatpush.msra.mxu0 0.0
      %1172 = vmatpush.msra.mxu0 0.0
      %1173 = vmatpush.msra.mxu0 0.0
      %1174 = vmatpush.msra.mxu0 0.0
      %1175 = vmatpush.msra.mxu0 0.0
      %1176 = vmatpush.msra.mxu0 0.0
      %1177 = vmatpush.msra.mxu0 0.0
      %1178 = vmatpush.msra.mxu0 0.0
      %1179 = vmatpush.msra.mxu0 0.0
      %1180 = vmatpush.msra.mxu0 %v1025
      %1181 = vmatpush.msra.mxu0 %v1024
      %1182 = vmatmul.f32.gmra.mxu0 %v749
      %v1183 = vpop.f32.mrf.mxu0
      %v1184 = vadd.f32 0.0, %v1183
      %1185 = vmatmul.f32.gmra.mxu0 %v752
      %v1186 = vpop.f32.mrf.mxu0
      %v1187 = vadd.f32 0.0, %v1186
      %1188 = vdwg.mxu0
      %1189 = vmatpush.msra.mxu0 0.0
      %1190 = vmatpush.msra.mxu0 0.0
      %1191 = vmatpush.msra.mxu0 0.0
      %1192 = vmatpush.msra.mxu0 0.0
      %1193 = vmatpush.msra.mxu0 0.0
      %1194 = vmatpush.msra.mxu0 0.0
      %1195 = vmatpush.msra.mxu0 0.0
      %1196 = vmatpush.msra.mxu0 0.0
      %1197 = vmatpush.msra.mxu0 0.0
      %1198 = vmatpush.msra.mxu0 0.0
      %1199 = vmatpush.msra.mxu0 0.0
      %1200 = vmatpush.msra.mxu0 0.0
      %1201 = vmatpush.msra.mxu0 0.0
      %1202 = vmatpush.msra.mxu0 0.0
      %1203 = vmatpush.msra.mxu0 %v1027
      %1204 = vmatpush.msra.mxu0 %v1026
      %1205 = vmatmul.f32.gmra.mxu0 %v778
      %v1206 = vpop.f32.mrf.mxu0
      %v1207 = vadd.f32 0.0, %v1206
      %1208 = vmatmul.f32.gmra.mxu0 %v781
      %v1209 = vpop.f32.mrf.mxu0
      %v1210 = vadd.f32 0.0, %v1209
      %1211 = vdwg.mxu0
      %v1212 = vmul.f32 %v1046, %v348
      %v1213 = vmul.f32 %v1049, %v363
      %v1214 = vmul.f32 %v1069, %v378
      %v1215 = vmul.f32 %v1072, %v393
      %v1216 = vmul.f32 %v1092, %v408
      %v1217 = vmul.f32 %v1095, %v423
      %v1218 = vmul.f32 %v1115, %v438
      %v1219 = vmul.f32 %v1118, %v453
      %v1220 = vmul.f32 %v1138, %v468
      %v1221 = vmul.f32 %v1141, %v483
      %v1222 = vmul.f32 %v1161, %v498
      %v1223 = vmul.f32 %v1164, %v513
      %v1224 = vmul.f32 %v1184, %v528
      %v1225 = vmul.f32 %v1187, %v543
      %v1226 = vmul.f32 %v1207, %v558
      %v1227 = vmul.f32 %v1210, %v573
      %v1228 = vld [vmem:[%s4] sm:$0xff]
      %v1229 = vld [vmem:[%s4 + $0x8] sm:$0xff]
      %v1231 = vsel %vm285, %v1212, 0
      %v1234 = vsel %vm285, %v1213, 0
      %v1237 = vsel %vm285, %v1214, 0
      %v1240 = vsel %vm285, %v1215, 0
      %v1243 = vsel %vm285, %v1216, 0
      %v1246 = vsel %vm285, %v1217, 0
      %v1249 = vsel %vm285, %v1218, 0
      %v1252 = vsel %vm285, %v1219, 0
      %v1255 = vsel %vm285, %v1220, 0
      %v1258 = vsel %vm285, %v1221, 0
      %v1261 = vsel %vm285, %v1222, 0
      %v1264 = vsel %vm285, %v1223, 0
      %v1267 = vsel %vm285, %v1224, 0
      %v1270 = vsel %vm285, %v1225, 0
      %v1273 = vsel %vm285, %v1226, 0
      %v1276 = vsel %vm285, %v1227, 0
      %1278 = vmatpush.msra.mxu0 0.0
      %1279 = vmatpush.msra.mxu0 0.0
      %1280 = vmatpush.msra.mxu0 0.0
      %1281 = vmatpush.msra.mxu0 0.0
      %1282 = vmatpush.msra.mxu0 0.0
      %1283 = vmatpush.msra.mxu0 0.0
      %1284 = vmatpush.msra.mxu0 0.0
      %1285 = vmatpush.msra.mxu0 0.0
      %1286 = vmatpush.msra.mxu0 0.0
      %1287 = vmatpush.msra.mxu0 0.0
      %1288 = vmatpush.msra.mxu0 0.0
      %1289 = vmatpush.msra.mxu0 0.0
      %1290 = vmatpush.msra.mxu0 0.0
      %1291 = vmatpush.msra.mxu0 0.0
      %1292 = vmatpush.msra.mxu0 %v1229
      %1293 = vmatpush.msra.mxu0 %v1228
      %1294 = vmatmul.f32.gmra.mxu0 %v1231
      %v1295 = vpop.f32.mrf.mxu0
      %v1296 = vadd.f32 0.0, %v1295
      %1297 = vmatmul.f32.gmra.mxu0 %v1234
      %v1298 = vpop.f32.mrf.mxu0
      %v1299 = vadd.f32 0.0, %v1298
      %1300 = vmatmul.f32.gmra.mxu0 %v1237
      %v1301 = vpop.f32.mrf.mxu0
      %v1302 = vadd.f32 0.0, %v1301
      %1303 = vmatmul.f32.gmra.mxu0 %v1240
      %v1304 = vpop.f32.mrf.mxu0
      %v1305 = vadd.f32 0.0, %v1304
      %1306 = vmatmul.f32.gmra.mxu0 %v1243
      %v1307 = vpop.f32.mrf.mxu0
      %v1308 = vadd.f32 0.0, %v1307
      %1309 = vmatmul.f32.gmra.mxu0 %v1246
      %v1310 = vpop.f32.mrf.mxu0
      %v1311 = vadd.f32 0.0, %v1310
      %1312 = vmatmul.f32.gmra.mxu0 %v1249
      %v1313 = vpop.f32.mrf.mxu0
      %v1314 = vadd.f32 0.0, %v1313
      %1315 = vmatmul.f32.gmra.mxu0 %v1252
      %v1316 = vpop.f32.mrf.mxu0
      %v1317 = vadd.f32 0.0, %v1316
      %1318 = vmatmul.f32.gmra.mxu0 %v1255
      %v1319 = vpop.f32.mrf.mxu0
      %v1320 = vadd.f32 0.0, %v1319
      %1321 = vmatmul.f32.gmra.mxu0 %v1258
      %v1322 = vpop.f32.mrf.mxu0
      %v1323 = vadd.f32 0.0, %v1322
      %1324 = vmatmul.f32.gmra.mxu0 %v1261
      %v1325 = vpop.f32.mrf.mxu0
      %v1326 = vadd.f32 0.0, %v1325
      %1327 = vmatmul.f32.gmra.mxu0 %v1264
      %v1328 = vpop.f32.mrf.mxu0
      %v1329 = vadd.f32 0.0, %v1328
      %1330 = vmatmul.f32.gmra.mxu0 %v1267
      %v1331 = vpop.f32.mrf.mxu0
      %v1332 = vadd.f32 0.0, %v1331
      %1333 = vmatmul.f32.gmra.mxu0 %v1270
      %v1334 = vpop.f32.mrf.mxu0
      %v1335 = vadd.f32 0.0, %v1334
      %1336 = vmatmul.f32.gmra.mxu0 %v1273
      %v1337 = vpop.f32.mrf.mxu0
      %v1338 = vadd.f32 0.0, %v1337
      %1339 = vmatmul.f32.gmra.mxu0 %v1276
      %v1340 = vpop.f32.mrf.mxu0
      %v1341 = vadd.f32 0.0, %v1340
      %1342 = vdwg.mxu0
      %v1343 = vadd.f32 %v253, %v1296
      %v1344 = vadd.f32 %v254, %v1299
      %v1345 = vadd.f32 %v255, %v1302
      %v1346 = vadd.f32 %v256, %v1305
      %v1347 = vadd.f32 %v257, %v1308
      %v1348 = vadd.f32 %v258, %v1311
      %v1349 = vadd.f32 %v259, %v1314
      %v1350 = vadd.f32 %v260, %v1317
      %v1351 = vadd.f32 %v261, %v1320
      %v1352 = vadd.f32 %v262, %v1323
      %v1353 = vadd.f32 %v263, %v1326
      %v1354 = vadd.f32 %v264, %v1329
      %v1355 = vadd.f32 %v265, %v1332
      %v1356 = vadd.f32 %v266, %v1335
      %v1357 = vadd.f32 %v267, %v1338
      %v1358 = vadd.f32 %v268, %v1341
      %1359 = vst.msk [vmem:[%s251] sm:$0xff] %vm827, %v1343
      %1360 = vst.msk [vmem:[%s251 + $0x8] sm:$0xff] %vm827, %v1344
      %1361 = vst.msk [vmem:[%s251 + $0x10] sm:$0xff] %vm827, %v1345
      %1362 = vst.msk [vmem:[%s251 + $0x18] sm:$0xff] %vm827, %v1346
      %1363 = vst.msk [vmem:[%s251 + $0x20] sm:$0xff] %vm827, %v1347
      %1364 = vst.msk [vmem:[%s251 + $0x28] sm:$0xff] %vm827, %v1348
      %1365 = vst.msk [vmem:[%s251 + $0x30] sm:$0xff] %vm827, %v1349
      %1366 = vst.msk [vmem:[%s251 + $0x38] sm:$0xff] %vm827, %v1350
      %1367 = vst.msk [vmem:[%s251 + $0x40] sm:$0xff] %vm827, %v1351
      %1368 = vst.msk [vmem:[%s251 + $0x48] sm:$0xff] %vm827, %v1352
      %1369 = vst.msk [vmem:[%s251 + $0x50] sm:$0xff] %vm827, %v1353
      %1370 = vst.msk [vmem:[%s251 + $0x58] sm:$0xff] %vm827, %v1354
      %1371 = vst.msk [vmem:[%s251 + $0x60] sm:$0xff] %vm827, %v1355
      %1372 = vst.msk [vmem:[%s251 + $0x68] sm:$0xff] %vm827, %v1356
      %1373 = vst.msk [vmem:[%s251 + $0x70] sm:$0xff] %vm827, %v1357
      %1374 = vst.msk [vmem:[%s251 + $0x78] sm:$0xff] %vm827, %v1358
      %s1375 = smul.u32 16, %s16
      %p1376 = scmp.lt.s32.totalorder %s1375, 31
      %s1377 = scalar_select %p1376, %s1375, 31
      %s1378 = smul.addr %s1377, 8
      %s1379 = scalar_lea.vmem %s5, %s1378
      // Predicated region
      $region41: #{tpu_custom_call.1} parent=39 // pred_check
        %p1380 = pneg %p149
      $region42: #{tpu_custom_call.1} parent=39 // pred_check_branch
        %1382 = sbr.rel (%p1380) target = $region44
      $region43: #{tpu_custom_call.1} parent=39 // pred_region
        %s1383 = smul.u32 16, %s16
      $region44: #{tpu_custom_call.1} parent=39 // pred_fallthru
        _
    $region40: #{tpu_custom_call.1} parent=5 // pred_fallthru
      _
    %p1384 = scmp.le.s32.totalorder 2, %s11
    // Predicated region
    $region45: #{tpu_custom_call.1} parent=5 // pred_check
      %p1385 = pneg %p1384
    $region46: #{tpu_custom_call.1} parent=5 // pred_check_branch
      %1387 = sbr.rel (%p1385) target = $region48
    $region47: #{tpu_custom_call.1} parent=5 // pred_region
      %s1388 = ssub.s32 %s11, 2
      // Predicated region
      $region49: #{tpu_custom_call.1} parent=47 // pred_check
        %p1389 = pneg %p155
      $region50: #{tpu_custom_call.1} parent=47 // pred_check_branch
        %1391 = sbr.rel (%p1389) target = $region52
      $region51: #{tpu_custom_call.1} parent=47 // pred_region
        %s1392 = smul.u32 16, %s17
        %p1393 = scmp.lt.s32.totalorder %s1392, 31
        %s1394 = scalar_select %p1393, %s1392, 31
        %s1395 = smul.addr %s1394, 8
        %s1396 = scalar_lea.vmem %s5, %s1395
      $region52: #{tpu_custom_call.1} parent=47 // pred_fallthru
        _
    $region48: #{tpu_custom_call.1} parent=5 // pred_fallthru
      _
  $region6: #{tpu_custom_call.1} parent=0 // loop_footer
    %s15 = sadd.s32 1, %s11
  $region7: #{tpu_custom_call.1} parent=0 // loop_footer_branch
    %10 = sbr.rel target = $region3
  $region8: #{tpu_custom_call.1} parent=0 // loop_exit
    _

</llo_original>
